<compile_context>
chip_gen: v6e
topology: v6e:2x2x1
jax: 0.10.0
libtpu: 0.0.40
codegen_flags: <defaults>
</compile_context>

<pallas_src>
import jax
import jax.numpy as jnp
from jax.experimental import pallas as pl
from jax.experimental.pallas import tpu as pltpu


# ---------------------------------------------------------------------------
# Kernel
# ---------------------------------------------------------------------------
def _pos2d_kernel(col_ref, row_ref, out_ref):
    """col_ref: (w, F)  VMEM-resident col table
       row_ref: (h, F)  VMEM-resident row table
       out_ref: (th, tw, 2F) output block at grid position (i, j)."""
    th, tw, _ = out_ref.shape
    F = col_ref.shape[1]
    r0 = pl.multiple_of(pl.program_id(0) * th, th)   # first output row of this block
    c0 = pl.multiple_of(pl.program_id(1) * tw, tw)   # first output col of this block

    def write_row(i, carry):
        # First F channels: the col-table slab, identical for every output row.
        # Re-read from VMEM each iteration (vld is cheap; keeps live vregs small).
        out_ref[i, :, 0:F] = col_ref[pl.ds(c0, tw), :].astype(out_ref.dtype)
        # Last F channels: row_embed[r0 + i] broadcast across the tw columns.
        row_i = row_ref[pl.ds(r0 + i, 1), :]                         # (1, F)
        out_ref[i, :, F:] = jnp.broadcast_to(row_i, (tw, F)).astype(out_ref.dtype)
        return carry

    jax.lax.fori_loop(0, th, write_row, 0, unroll=(th <= 32))


# ---------------------------------------------------------------------------
# Tiling policy (VMEM-, F- and dtype-aware)
# ---------------------------------------------------------------------------
def _vmem_capacity_bytes():
    # 128 MiB per TensorCore on v5e/v6e, 64 MiB on v7x.  Fall back to the
    # tightest generation if the query is unavailable.
    try:
        return int(pltpu.get_tpu_info().vmem_capacity_bytes)
    except Exception:  # conservative fallback (v7x)
        return 64 << 20


def _sublane_multiple(itemsize):
    # Sub-32-bit dtypes pack 2/4 rows per sublane: require 8/16/32-row tiles.
    return max(8, 32 // itemsize)


def _largest_divisor_leq(n, cap, multiple=1):
    """Largest d dividing n with d <= cap and d % multiple == 0, else None."""
    for d in range(min(n, max(int(cap), 1)), 0, -1):
        if n % d == 0 and d % multiple == 0:
            return d
    return None


def _choose_tiles(h, w, F, itemsize, block_cap, block_floor):
    sub = _sublane_multiple(itemsize)
    row_bytes = w * 2 * F * itemsize          # one full-width output row
    total_bytes = h * row_bytes

    # Small output: a single block, or two equal h-halves (>= floor each) so
    # both TensorCores of a v7x megacore get a block to write.
    if total_bytes <= block_cap:
        if total_bytes >= 2 * block_floor and h % 2 == 0:
            return h // 2, w
        return h, w

    # Preferred: full-width blocks (one contiguous HBM slab each), tile h only.
    # th is a leading block dim -> no sublane-multiple constraint on it.
    if row_bytes <= block_cap:
        th = _largest_divisor_leq(h, block_cap // row_bytes) or 1
        return th, w

    # Huge-w fallback: split the width too.  tw is the 2nd-to-last block dim,
    # so it must be a multiple of the dtype sublane granularity (or equal w).
    max_tw = max(sub, (block_cap // (2 * F * itemsize)) // sub * sub)
    tw = _largest_divisor_leq(w, max_tw, multiple=sub) or w
    blk_row_bytes = tw * 2 * F * itemsize
    th = _largest_divisor_leq(h, max(1, block_cap // blk_row_bytes)) or 1
    return th, tw


# ---------------------------------------------------------------------------
# Wrapper
# ---------------------------------------------------------------------------
def position_embedding_2d(row_embed, col_embed, h, w, *, tile_h=None, tile_w=None):
    """row_embed: [max_r, F], col_embed: [max_c, F]  ->  pos [h, w, 2F].

    # TODO(synk): in PyTorch forward(h, w, device) h/w (and `device`) are runtime
    # arguments; in JAX h and w must be static Python ints (they define the
    # output shape) and device placement is implicit.
    """
    F = row_embed.shape[1]
    assert col_embed.shape[1] == F, "feature dim mismatch"
    assert h <= row_embed.shape[0] and w <= col_embed.shape[0], "h/w exceed table size"
    dtype = row_embed.dtype
    itemsize = jnp.dtype(dtype).itemsize

    # arange() embedding lookup == contiguous slice of the first w / h rows.
    col_w = jax.lax.slice(col_embed, (0, 0), (w, F))   # [w, F]
    row_h = jax.lax.slice(row_embed, (0, 0), (h, F))   # [h, F]

    # Per-generation output-block budget (double-buffered):
    #   v7x (64 MiB VMEM):    2 * 8 MiB  = 16 MiB
    #   v5e/v6e (128 MiB):    2 * 12 MiB = 24 MiB
    # plus the resident tables — all under the 32 MiB scoped limit set below
    # (and well under v7x's 64 MiB physical VMEM).
    vmem_cap = _vmem_capacity_bytes()
    block_cap = (8 << 20) if vmem_cap <= (64 << 20) else (12 << 20)
    block_floor = 2 << 20

    if tile_h is None and tile_w is None:
        th, tw = _choose_tiles(h, w, F, itemsize, block_cap, block_floor)
    else:
        th, tw = (tile_h or h), (tile_w or w)
    sub = _sublane_multiple(itemsize)
    assert h % th == 0 and w % tw == 0, "tiles must divide h / w exactly"
    assert tw == w or tw % sub == 0, "tw must be a sublane multiple or the full width"
    grid = (h // th, w // tw)

    out_block_bytes = th * tw * 2 * F * itemsize
    table_bytes = (h + w) * F * itemsize
    vmem_limit = int(max(32 << 20, 2 * out_block_bytes + 2 * table_bytes + (4 << 20)))

    cost = pl.CostEstimate(
        flops=0,
        transcendentals=0,
        bytes_accessed=itemsize * h * w * 2 * F + table_bytes,
    )

    # NOTE: the channel dim (2F) is never split by the BlockSpec, so any F is
    # correct; F that is not a multiple of 128 only turns the in-kernel lane
    # split at offset F into masked stores (slower, not wrong).
    return pl.pallas_call(
        _pos2d_kernel,
        out_shape=jax.ShapeDtypeStruct((h, w, 2 * F), dtype),
        grid_spec=pltpu.PrefetchScalarGridSpec(
            num_scalar_prefetch=0,
            grid=grid,
            in_specs=[
                # Both (tiny) tables fully VMEM-resident: constant block index
                # -> DMA'd once, never re-fetched across grid steps.
                pl.BlockSpec((w, F), lambda i, j: (0, 0)),   # col table
                pl.BlockSpec((h, F), lambda i, j: (0, 0)),   # row table
            ],
            out_specs=pl.BlockSpec((th, tw, 2 * F), lambda i, j: (i, j, 0)),
        ),
        compiler_params=pltpu.CompilerParams(
            dimension_semantics=("parallel", "parallel"),
            vmem_limit_bytes=vmem_limit,
        ),
        cost_estimate=cost,
    )(col_w, row_h)


if __name__ == "__main__":
    key = jax.random.PRNGKey(0)
    k_r, k_c = jax.random.split(key)

    # Small shapes consistent with the module (defaults: 50 x 50 positions).
    max_r, max_c = 50, 50
    F = 128          # lane-aligned feature dim (module default is 256)

    # nn.init.uniform_ -> U[0, 1) learned tables (synthetic, non-trainable here).
    row_embed = jax.random.uniform(k_r, (max_r, F), dtype=jnp.float32)
    col_embed = jax.random.uniform(k_c, (max_c, F), dtype=jnp.float32)

    def reference(h, w):
        # Pure-JAX mirror of the PyTorch forward.
        x_emb = col_embed[:w]        # [w, F]
        y_emb = row_embed[:h]        # [h, F]
        return jnp.concatenate(
            [jnp.broadcast_to(x_emb[None, :, :], (h, w, F)),
             jnp.broadcast_to(y_emb[:, None, :], (h, w, F))],
            axis=-1)

    # 1) Default (auto-tiled) path: small shape -> a single full-array block.
    h, w = 16, 16
    pos = jax.block_until_ready(position_embedding_2d(row_embed, col_embed, h, w))
    assert pos.shape == (h, w, 2 * F), pos.shape
    assert jnp.array_equal(pos, reference(h, w)), "mismatch vs reference (auto tiling)"

    # 2) Forced multi-block tiling: exercises grid > 1, in-kernel table slicing
    #    by program_id, and the per-row streamed stores.
    h2, w2 = 48, 40
    pos2 = jax.block_until_ready(
        position_embedding_2d(row_embed, col_embed, h2, w2, tile_h=16, tile_w=8))
    assert pos2.shape == (h2, w2, 2 * F), pos2.shape
    assert jnp.array_equal(pos2, reference(h2, w2)), "mismatch vs reference (tiled)"

    print("KERNEL_OK")
</pallas_src>

<mosaic_0001>
module attributes {stable_mosaic.version = 11 : i64} {
  func.func @_pos2d_kernel(%arg0: i32, %arg1: i32, %arg2: memref<16x128xf32, #tpu.memory_space<vmem>>, %arg3: memref<16x128xf32, #tpu.memory_space<vmem>>, %arg4: memref<16x16x256xf32, #tpu.memory_space<vmem>>) attributes {dimension_semantics = [#tpu.dimension_semantics<parallel>, #tpu.dimension_semantics<parallel>], iteration_bounds = array<i64: 1, 1>, scalar_prefetch = 0 : i64, scratch_operands = 0 : i64, tpu.core_type = #tpu.core_type<tc>, window_params = [{pipeline_mode = #tpu.pipeline_mode<synchronous>, transform_indices = @transform_0, window_bounds = array<i64: 16, 128>}, {pipeline_mode = #tpu.pipeline_mode<synchronous>, transform_indices = @transform_1, window_bounds = array<i64: 16, 128>}, {transform_indices = @transform_2, window_bounds = array<i64: 16, 16, 256>}]} {
    %c16_i32 = arith.constant 16 : i32
    %0 = arith.muli %arg0, %c16_i32 : i32
    %1 = tpu.assume_multiple %0, 16 : i32
    %c16_i32_0 = arith.constant 16 : i32
    %2 = arith.muli %arg1, %c16_i32_0 : i32
    %3 = tpu.assume_multiple %2, 16 : i32
    %c0_i32 = arith.constant 0 : i32
    %4 = arith.index_cast %3 : i32 to index
    %c0 = arith.constant 0 : index
    %5 = vector.load %arg2[%4, %c0] : memref<16x128xf32, #tpu.memory_space<vmem>>, vector<16x128xf32>
    %6 = arith.index_cast %c0_i32 : i32 to index
    %c0_1 = arith.constant 0 : index
    %c0_2 = arith.constant 0 : index
    %7 = vector.load %arg4[%6, %c0_1, %c0_2] : memref<16x16x256xf32, #tpu.memory_space<vmem>>, vector<1x16x128xf32>
    %8 = vector.shape_cast %7 : vector<1x16x128xf32> to vector<16x128xf32>
    %9 = vector.shape_cast %5 : vector<16x128xf32> to vector<1x16x128xf32>
    tpu.vector_store %arg4[%6, %c0_1, %c0_2], %9 {strides = array<i32>} : memref<16x16x256xf32, #tpu.memory_space<vmem>>, vector<1x16x128xf32>,
    %10 = arith.addi %1, %c0_i32 : i32
    %11 = arith.index_cast %10 : i32 to index
    %c0_3 = arith.constant 0 : index
    %12 = vector.load %arg3[%11, %c0_3] : memref<16x128xf32, #tpu.memory_space<vmem>>, vector<1x128xf32>
    %13 = vector.shape_cast %12 : vector<1x128xf32> to vector<1x128xf32>
    %14 = vector.broadcast %13 : vector<1x128xf32> to vector<16x128xf32>
    %15 = arith.index_cast %c0_i32 : i32 to index
    %c0_4 = arith.constant 0 : index
    %c128 = arith.constant 128 : index
    %16 = vector.load %arg4[%15, %c0_4, %c128] : memref<16x16x256xf32, #tpu.memory_space<vmem>>, vector<1x16x128xf32>
    %17 = vector.shape_cast %16 : vector<1x16x128xf32> to vector<16x128xf32>
    %18 = vector.shape_cast %14 : vector<16x128xf32> to vector<1x16x128xf32>
    tpu.vector_store %arg4[%15, %c0_4, %c128], %18 {strides = array<i32>} : memref<16x16x256xf32, #tpu.memory_space<vmem>>, vector<1x16x128xf32>,
    %c1_i32 = arith.constant 1 : i32
    %19 = arith.index_cast %3 : i32 to index
    %c0_5 = arith.constant 0 : index
    %20 = vector.load %arg2[%19, %c0_5] : memref<16x128xf32, #tpu.memory_space<vmem>>, vector<16x128xf32>
    %21 = arith.index_cast %c1_i32 : i32 to index
    %c0_6 = arith.constant 0 : index
    %c0_7 = arith.constant 0 : index
    %22 = vector.load %arg4[%21, %c0_6, %c0_7] : memref<16x16x256xf32, #tpu.memory_space<vmem>>, vector<1x16x128xf32>
    %23 = vector.shape_cast %22 : vector<1x16x128xf32> to vector<16x128xf32>
    %24 = vector.shape_cast %20 : vector<16x128xf32> to vector<1x16x128xf32>
    tpu.vector_store %arg4[%21, %c0_6, %c0_7], %24 {strides = array<i32>} : memref<16x16x256xf32, #tpu.memory_space<vmem>>, vector<1x16x128xf32>,
    %25 = arith.addi %1, %c1_i32 : i32
    %26 = arith.index_cast %25 : i32 to index
    %c0_8 = arith.constant 0 : index
    %27 = vector.load %arg3[%26, %c0_8] : memref<16x128xf32, #tpu.memory_space<vmem>>, vector<1x128xf32>
    %28 = vector.shape_cast %27 : vector<1x128xf32> to vector<1x128xf32>
    %29 = vector.broadcast %28 : vector<1x128xf32> to vector<16x128xf32>
    %30 = arith.index_cast %c1_i32 : i32 to index
    %c0_9 = arith.constant 0 : index
    %c128_10 = arith.constant 128 : index
    %31 = vector.load %arg4[%30, %c0_9, %c128_10] : memref<16x16x256xf32, #tpu.memory_space<vmem>>, vector<1x16x128xf32>
    %32 = vector.shape_cast %31 : vector<1x16x128xf32> to vector<16x128xf32>
    %33 = vector.shape_cast %29 : vector<16x128xf32> to vector<1x16x128xf32>
    tpu.vector_store %arg4[%30, %c0_9, %c128_10], %33 {strides = array<i32>} : memref<16x16x256xf32, #tpu.memory_space<vmem>>, vector<1x16x128xf32>,
    %c2_i32 = arith.constant 2 : i32
    %34 = arith.index_cast %3 : i32 to index
    %c0_11 = arith.constant 0 : index
    %35 = vector.load %arg2[%34, %c0_11] : memref<16x128xf32, #tpu.memory_space<vmem>>, vector<16x128xf32>
    %36 = arith.index_cast %c2_i32 : i32 to index
    %c0_12 = arith.constant 0 : index
    %c0_13 = arith.constant 0 : index
    %37 = vector.load %arg4[%36, %c0_12, %c0_13] : memref<16x16x256xf32, #tpu.memory_space<vmem>>, vector<1x16x128xf32>
    %38 = vector.shape_cast %37 : vector<1x16x128xf32> to vector<16x128xf32>
    %39 = vector.shape_cast %35 : vector<16x128xf32> to vector<1x16x128xf32>
    tpu.vector_store %arg4[%36, %c0_12, %c0_13], %39 {strides = array<i32>} : memref<16x16x256xf32, #tpu.memory_space<vmem>>, vector<1x16x128xf32>,
    %40 = arith.addi %1, %c2_i32 : i32
    %41 = arith.index_cast %40 : i32 to index
    %c0_14 = arith.constant 0 : index
    %42 = vector.load %arg3[%41, %c0_14] : memref<16x128xf32, #tpu.memory_space<vmem>>, vector<1x128xf32>
    %43 = vector.shape_cast %42 : vector<1x128xf32> to vector<1x128xf32>
    %44 = vector.broadcast %43 : vector<1x128xf32> to vector<16x128xf32>
    %45 = arith.index_cast %c2_i32 : i32 to index
    %c0_15 = arith.constant 0 : index
    %c128_16 = arith.constant 128 : index
    %46 = vector.load %arg4[%45, %c0_15, %c128_16] : memref<16x16x256xf32, #tpu.memory_space<vmem>>, vector<1x16x128xf32>
    %47 = vector.shape_cast %46 : vector<1x16x128xf32> to vector<16x128xf32>
    %48 = vector.shape_cast %44 : vector<16x128xf32> to vector<1x16x128xf32>
    tpu.vector_store %arg4[%45, %c0_15, %c128_16], %48 {strides = array<i32>} : memref<16x16x256xf32, #tpu.memory_space<vmem>>, vector<1x16x128xf32>,
    %c3_i32 = arith.constant 3 : i32
    %49 = arith.index_cast %3 : i32 to index
    %c0_17 = arith.constant 0 : index
    %50 = vector.load %arg2[%49, %c0_17] : memref<16x128xf32, #tpu.memory_space<vmem>>, vector<16x128xf32>
    %51 = arith.index_cast %c3_i32 : i32 to index
    %c0_18 = arith.constant 0 : index
    %c0_19 = arith.constant 0 : index
    %52 = vector.load %arg4[%51, %c0_18, %c0_19] : memref<16x16x256xf32, #tpu.memory_space<vmem>>, vector<1x16x128xf32>
    %53 = vector.shape_cast %52 : vector<1x16x128xf32> to vector<16x128xf32>
    %54 = vector.shape_cast %50 : vector<16x128xf32> to vector<1x16x128xf32>
    tpu.vector_store %arg4[%51, %c0_18, %c0_19], %54 {strides = array<i32>} : memref<16x16x256xf32, #tpu.memory_space<vmem>>, vector<1x16x128xf32>,
    %55 = arith.addi %1, %c3_i32 : i32
    %56 = arith.index_cast %55 : i32 to index
    %c0_20 = arith.constant 0 : index
    %57 = vector.load %arg3[%56, %c0_20] : memref<16x128xf32, #tpu.memory_space<vmem>>, vector<1x128xf32>
    %58 = vector.shape_cast %57 : vector<1x128xf32> to vector<1x128xf32>
    %59 = vector.broadcast %58 : vector<1x128xf32> to vector<16x128xf32>
    %60 = arith.index_cast %c3_i32 : i32 to index
    %c0_21 = arith.constant 0 : index
    %c128_22 = arith.constant 128 : index
    %61 = vector.load %arg4[%60, %c0_21, %c128_22] : memref<16x16x256xf32, #tpu.memory_space<vmem>>, vector<1x16x128xf32>
    %62 = vector.shape_cast %61 : vector<1x16x128xf32> to vector<16x128xf32>
    %63 = vector.shape_cast %59 : vector<16x128xf32> to vector<1x16x128xf32>
    tpu.vector_store %arg4[%60, %c0_21, %c128_22], %63 {strides = array<i32>} : memref<16x16x256xf32, #tpu.memory_space<vmem>>, vector<1x16x128xf32>,
    %c4_i32 = arith.constant 4 : i32
    %64 = arith.index_cast %3 : i32 to index
    %c0_23 = arith.constant 0 : index
    %65 = vector.load %arg2[%64, %c0_23] : memref<16x128xf32, #tpu.memory_space<vmem>>, vector<16x128xf32>
    %66 = arith.index_cast %c4_i32 : i32 to index
    %c0_24 = arith.constant 0 : index
    %c0_25 = arith.constant 0 : index
    %67 = vector.load %arg4[%66, %c0_24, %c0_25] : memref<16x16x256xf32, #tpu.memory_space<vmem>>, vector<1x16x128xf32>
    %68 = vector.shape_cast %67 : vector<1x16x128xf32> to vector<16x128xf32>
    %69 = vector.shape_cast %65 : vector<16x128xf32> to vector<1x16x128xf32>
    tpu.vector_store %arg4[%66, %c0_24, %c0_25], %69 {strides = array<i32>} : memref<16x16x256xf32, #tpu.memory_space<vmem>>, vector<1x16x128xf32>,
    %70 = arith.addi %1, %c4_i32 : i32
    %71 = arith.index_cast %70 : i32 to index
    %c0_26 = arith.constant 0 : index
    %72 = vector.load %arg3[%71, %c0_26] : memref<16x128xf32, #tpu.memory_space<vmem>>, vector<1x128xf32>
    %73 = vector.shape_cast %72 : vector<1x128xf32> to vector<1x128xf32>
    %74 = vector.broadcast %73 : vector<1x128xf32> to vector<16x128xf32>
    %75 = arith.index_cast %c4_i32 : i32 to index
    %c0_27 = arith.constant 0 : index
    %c128_28 = arith.constant 128 : index
    %76 = vector.load %arg4[%75, %c0_27, %c128_28] : memref<16x16x256xf32, #tpu.memory_space<vmem>>, vector<1x16x128xf32>
    %77 = vector.shape_cast %76 : vector<1x16x128xf32> to vector<16x128xf32>
    %78 = vector.shape_cast %74 : vector<16x128xf32> to vector<1x16x128xf32>
    tpu.vector_store %arg4[%75, %c0_27, %c128_28], %78 {strides = array<i32>} : memref<16x16x256xf32, #tpu.memory_space<vmem>>, vector<1x16x128xf32>,
    %c5_i32 = arith.constant 5 : i32
    %79 = arith.index_cast %3 : i32 to index
    %c0_29 = arith.constant 0 : index
    %80 = vector.load %arg2[%79, %c0_29] : memref<16x128xf32, #tpu.memory_space<vmem>>, vector<16x128xf32>
    %81 = arith.index_cast %c5_i32 : i32 to index
    %c0_30 = arith.constant 0 : index
    %c0_31 = arith.constant 0 : index
    %82 = vector.load %arg4[%81, %c0_30, %c0_31] : memref<16x16x256xf32, #tpu.memory_space<vmem>>, vector<1x16x128xf32>
    %83 = vector.shape_cast %82 : vector<1x16x128xf32> to vector<16x128xf32>
    %84 = vector.shape_cast %80 : vector<16x128xf32> to vector<1x16x128xf32>
    tpu.vector_store %arg4[%81, %c0_30, %c0_31], %84 {strides = array<i32>} : memref<16x16x256xf32, #tpu.memory_space<vmem>>, vector<1x16x128xf32>,
    %85 = arith.addi %1, %c5_i32 : i32
    %86 = arith.index_cast %85 : i32 to index
    %c0_32 = arith.constant 0 : index
    %87 = vector.load %arg3[%86, %c0_32] : memref<16x128xf32, #tpu.memory_space<vmem>>, vector<1x128xf32>
    %88 = vector.shape_cast %87 : vector<1x128xf32> to vector<1x128xf32>
    %89 = vector.broadcast %88 : vector<1x128xf32> to vector<16x128xf32>
    %90 = arith.index_cast %c5_i32 : i32 to index
    %c0_33 = arith.constant 0 : index
    %c128_34 = arith.constant 128 : index
    %91 = vector.load %arg4[%90, %c0_33, %c128_34] : memref<16x16x256xf32, #tpu.memory_space<vmem>>, vector<1x16x128xf32>
    %92 = vector.shape_cast %91 : vector<1x16x128xf32> to vector<16x128xf32>
    %93 = vector.shape_cast %89 : vector<16x128xf32> to vector<1x16x128xf32>
    tpu.vector_store %arg4[%90, %c0_33, %c128_34], %93 {strides = array<i32>} : memref<16x16x256xf32, #tpu.memory_space<vmem>>, vector<1x16x128xf32>,
    %c6_i32 = arith.constant 6 : i32
    %94 = arith.index_cast %3 : i32 to index
    %c0_35 = arith.constant 0 : index
    %95 = vector.load %arg2[%94, %c0_35] : memref<16x128xf32, #tpu.memory_space<vmem>>, vector<16x128xf32>
    %96 = arith.index_cast %c6_i32 : i32 to index
    %c0_36 = arith.constant 0 : index
    %c0_37 = arith.constant 0 : index
    %97 = vector.load %arg4[%96, %c0_36, %c0_37] : memref<16x16x256xf32, #tpu.memory_space<vmem>>, vector<1x16x128xf32>
    %98 = vector.shape_cast %97 : vector<1x16x128xf32> to vector<16x128xf32>
    %99 = vector.shape_cast %95 : vector<16x128xf32> to vector<1x16x128xf32>
    tpu.vector_store %arg4[%96, %c0_36, %c0_37], %99 {strides = array<i32>} : memref<16x16x256xf32, #tpu.memory_space<vmem>>, vector<1x16x128xf32>,
    %100 = arith.addi %1, %c6_i32 : i32
    %101 = arith.index_cast %100 : i32 to index
    %c0_38 = arith.constant 0 : index
    %102 = vector.load %arg3[%101, %c0_38] : memref<16x128xf32, #tpu.memory_space<vmem>>, vector<1x128xf32>
    %103 = vector.shape_cast %102 : vector<1x128xf32> to vector<1x128xf32>
    %104 = vector.broadcast %103 : vector<1x128xf32> to vector<16x128xf32>
    %105 = arith.index_cast %c6_i32 : i32 to index
    %c0_39 = arith.constant 0 : index
    %c128_40 = arith.constant 128 : index
    %106 = vector.load %arg4[%105, %c0_39, %c128_40] : memref<16x16x256xf32, #tpu.memory_space<vmem>>, vector<1x16x128xf32>
    %107 = vector.shape_cast %106 : vector<1x16x128xf32> to vector<16x128xf32>
    %108 = vector.shape_cast %104 : vector<16x128xf32> to vector<1x16x128xf32>
    tpu.vector_store %arg4[%105, %c0_39, %c128_40], %108 {strides = array<i32>} : memref<16x16x256xf32, #tpu.memory_space<vmem>>, vector<1x16x128xf32>,
    %c7_i32 = arith.constant 7 : i32
    %109 = arith.index_cast %3 : i32 to index
    %c0_41 = arith.constant 0 : index
    %110 = vector.load %arg2[%109, %c0_41] : memref<16x128xf32, #tpu.memory_space<vmem>>, vector<16x128xf32>
    %111 = arith.index_cast %c7_i32 : i32 to index
    %c0_42 = arith.constant 0 : index
    %c0_43 = arith.constant 0 : index
    %112 = vector.load %arg4[%111, %c0_42, %c0_43] : memref<16x16x256xf32, #tpu.memory_space<vmem>>, vector<1x16x128xf32>
    %113 = vector.shape_cast %112 : vector<1x16x128xf32> to vector<16x128xf32>
    %114 = vector.shape_cast %110 : vector<16x128xf32> to vector<1x16x128xf32>
    tpu.vector_store %arg4[%111, %c0_42, %c0_43], %114 {strides = array<i32>} : memref<16x16x256xf32, #tpu.memory_space<vmem>>, vector<1x16x128xf32>,
    %115 = arith.addi %1, %c7_i32 : i32
    %116 = arith.index_cast %115 : i32 to index
    %c0_44 = arith.constant 0 : index
    %117 = vector.load %arg3[%116, %c0_44] : memref<16x128xf32, #tpu.memory_space<vmem>>, vector<1x128xf32>
    %118 = vector.shape_cast %117 : vector<1x128xf32> to vector<1x128xf32>
    %119 = vector.broadcast %118 : vector<1x128xf32> to vector<16x128xf32>
    %120 = arith.index_cast %c7_i32 : i32 to index
    %c0_45 = arith.constant 0 : index
    %c128_46 = arith.constant 128 : index
    %121 = vector.load %arg4[%120, %c0_45, %c128_46] : memref<16x16x256xf32, #tpu.memory_space<vmem>>, vector<1x16x128xf32>
    %122 = vector.shape_cast %121 : vector<1x16x128xf32> to vector<16x128xf32>
    %123 = vector.shape_cast %119 : vector<16x128xf32> to vector<1x16x128xf32>
    tpu.vector_store %arg4[%120, %c0_45, %c128_46], %123 {strides = array<i32>} : memref<16x16x256xf32, #tpu.memory_space<vmem>>, vector<1x16x128xf32>,
    %c8_i32 = arith.constant 8 : i32
    %124 = arith.index_cast %3 : i32 to index
    %c0_47 = arith.constant 0 : index
    %125 = vector.load %arg2[%124, %c0_47] : memref<16x128xf32, #tpu.memory_space<vmem>>, vector<16x128xf32>
    %126 = arith.index_cast %c8_i32 : i32 to index
    %c0_48 = arith.constant 0 : index
    %c0_49 = arith.constant 0 : index
    %127 = vector.load %arg4[%126, %c0_48, %c0_49] : memref<16x16x256xf32, #tpu.memory_space<vmem>>, vector<1x16x128xf32>
    %128 = vector.shape_cast %127 : vector<1x16x128xf32> to vector<16x128xf32>
    %129 = vector.shape_cast %125 : vector<16x128xf32> to vector<1x16x128xf32>
    tpu.vector_store %arg4[%126, %c0_48, %c0_49], %129 {strides = array<i32>} : memref<16x16x256xf32, #tpu.memory_space<vmem>>, vector<1x16x128xf32>,
    %130 = arith.addi %1, %c8_i32 : i32
    %131 = arith.index_cast %130 : i32 to index
    %c0_50 = arith.constant 0 : index
    %132 = vector.load %arg3[%131, %c0_50] : memref<16x128xf32, #tpu.memory_space<vmem>>, vector<1x128xf32>
    %133 = vector.shape_cast %132 : vector<1x128xf32> to vector<1x128xf32>
    %134 = vector.broadcast %133 : vector<1x128xf32> to vector<16x128xf32>
    %135 = arith.index_cast %c8_i32 : i32 to index
    %c0_51 = arith.constant 0 : index
    %c128_52 = arith.constant 128 : index
    %136 = vector.load %arg4[%135, %c0_51, %c128_52] : memref<16x16x256xf32, #tpu.memory_space<vmem>>, vector<1x16x128xf32>
    %137 = vector.shape_cast %136 : vector<1x16x128xf32> to vector<16x128xf32>
    %138 = vector.shape_cast %134 : vector<16x128xf32> to vector<1x16x128xf32>
    tpu.vector_store %arg4[%135, %c0_51, %c128_52], %138 {strides = array<i32>} : memref<16x16x256xf32, #tpu.memory_space<vmem>>, vector<1x16x128xf32>,
    %c9_i32 = arith.constant 9 : i32
    %139 = arith.index_cast %3 : i32 to index
    %c0_53 = arith.constant 0 : index
    %140 = vector.load %arg2[%139, %c0_53] : memref<16x128xf32, #tpu.memory_space<vmem>>, vector<16x128xf32>
    %141 = arith.index_cast %c9_i32 : i32 to index
    %c0_54 = arith.constant 0 : index
    %c0_55 = arith.constant 0 : index
    %142 = vector.load %arg4[%141, %c0_54, %c0_55] : memref<16x16x256xf32, #tpu.memory_space<vmem>>, vector<1x16x128xf32>
    %143 = vector.shape_cast %142 : vector<1x16x128xf32> to vector<16x128xf32>
    %144 = vector.shape_cast %140 : vector<16x128xf32> to vector<1x16x128xf32>
    tpu.vector_store %arg4[%141, %c0_54, %c0_55], %144 {strides = array<i32>} : memref<16x16x256xf32, #tpu.memory_space<vmem>>, vector<1x16x128xf32>,
    %145 = arith.addi %1, %c9_i32 : i32
    %146 = arith.index_cast %145 : i32 to index
    %c0_56 = arith.constant 0 : index
    %147 = vector.load %arg3[%146, %c0_56] : memref<16x128xf32, #tpu.memory_space<vmem>>, vector<1x128xf32>
    %148 = vector.shape_cast %147 : vector<1x128xf32> to vector<1x128xf32>
    %149 = vector.broadcast %148 : vector<1x128xf32> to vector<16x128xf32>
    %150 = arith.index_cast %c9_i32 : i32 to index
    %c0_57 = arith.constant 0 : index
    %c128_58 = arith.constant 128 : index
    %151 = vector.load %arg4[%150, %c0_57, %c128_58] : memref<16x16x256xf32, #tpu.memory_space<vmem>>, vector<1x16x128xf32>
    %152 = vector.shape_cast %151 : vector<1x16x128xf32> to vector<16x128xf32>
    %153 = vector.shape_cast %149 : vector<16x128xf32> to vector<1x16x128xf32>
    tpu.vector_store %arg4[%150, %c0_57, %c128_58], %153 {strides = array<i32>} : memref<16x16x256xf32, #tpu.memory_space<vmem>>, vector<1x16x128xf32>,
    %c10_i32 = arith.constant 10 : i32
    %154 = arith.index_cast %3 : i32 to index
    %c0_59 = arith.constant 0 : index
    %155 = vector.load %arg2[%154, %c0_59] : memref<16x128xf32, #tpu.memory_space<vmem>>, vector<16x128xf32>
    %156 = arith.index_cast %c10_i32 : i32 to index
    %c0_60 = arith.constant 0 : index
    %c0_61 = arith.constant 0 : index
    %157 = vector.load %arg4[%156, %c0_60, %c0_61] : memref<16x16x256xf32, #tpu.memory_space<vmem>>, vector<1x16x128xf32>
    %158 = vector.shape_cast %157 : vector<1x16x128xf32> to vector<16x128xf32>
    %159 = vector.shape_cast %155 : vector<16x128xf32> to vector<1x16x128xf32>
    tpu.vector_store %arg4[%156, %c0_60, %c0_61], %159 {strides = array<i32>} : memref<16x16x256xf32, #tpu.memory_space<vmem>>, vector<1x16x128xf32>,
    %160 = arith.addi %1, %c10_i32 : i32
    %161 = arith.index_cast %160 : i32 to index
    %c0_62 = arith.constant 0 : index
    %162 = vector.load %arg3[%161, %c0_62] : memref<16x128xf32, #tpu.memory_space<vmem>>, vector<1x128xf32>
    %163 = vector.shape_cast %162 : vector<1x128xf32> to vector<1x128xf32>
    %164 = vector.broadcast %163 : vector<1x128xf32> to vector<16x128xf32>
    %165 = arith.index_cast %c10_i32 : i32 to index
    %c0_63 = arith.constant 0 : index
    %c128_64 = arith.constant 128 : index
    %166 = vector.load %arg4[%165, %c0_63, %c128_64] : memref<16x16x256xf32, #tpu.memory_space<vmem>>, vector<1x16x128xf32>
    %167 = vector.shape_cast %166 : vector<1x16x128xf32> to vector<16x128xf32>
    %168 = vector.shape_cast %164 : vector<16x128xf32> to vector<1x16x128xf32>
    tpu.vector_store %arg4[%165, %c0_63, %c128_64], %168 {strides = array<i32>} : memref<16x16x256xf32, #tpu.memory_space<vmem>>, vector<1x16x128xf32>,
    %c11_i32 = arith.constant 11 : i32
    %169 = arith.index_cast %3 : i32 to index
    %c0_65 = arith.constant 0 : index
    %170 = vector.load %arg2[%169, %c0_65] : memref<16x128xf32, #tpu.memory_space<vmem>>, vector<16x128xf32>
    %171 = arith.index_cast %c11_i32 : i32 to index
    %c0_66 = arith.constant 0 : index
    %c0_67 = arith.constant 0 : index
    %172 = vector.load %arg4[%171, %c0_66, %c0_67] : memref<16x16x256xf32, #tpu.memory_space<vmem>>, vector<1x16x128xf32>
    %173 = vector.shape_cast %172 : vector<1x16x128xf32> to vector<16x128xf32>
    %174 = vector.shape_cast %170 : vector<16x128xf32> to vector<1x16x128xf32>
    tpu.vector_store %arg4[%171, %c0_66, %c0_67], %174 {strides = array<i32>} : memref<16x16x256xf32, #tpu.memory_space<vmem>>, vector<1x16x128xf32>,
    %175 = arith.addi %1, %c11_i32 : i32
    %176 = arith.index_cast %175 : i32 to index
    %c0_68 = arith.constant 0 : index
    %177 = vector.load %arg3[%176, %c0_68] : memref<16x128xf32, #tpu.memory_space<vmem>>, vector<1x128xf32>
    %178 = vector.shape_cast %177 : vector<1x128xf32> to vector<1x128xf32>
    %179 = vector.broadcast %178 : vector<1x128xf32> to vector<16x128xf32>
    %180 = arith.index_cast %c11_i32 : i32 to index
    %c0_69 = arith.constant 0 : index
    %c128_70 = arith.constant 128 : index
    %181 = vector.load %arg4[%180, %c0_69, %c128_70] : memref<16x16x256xf32, #tpu.memory_space<vmem>>, vector<1x16x128xf32>
    %182 = vector.shape_cast %181 : vector<1x16x128xf32> to vector<16x128xf32>
    %183 = vector.shape_cast %179 : vector<16x128xf32> to vector<1x16x128xf32>
    tpu.vector_store %arg4[%180, %c0_69, %c128_70], %183 {strides = array<i32>} : memref<16x16x256xf32, #tpu.memory_space<vmem>>, vector<1x16x128xf32>,
    %c12_i32 = arith.constant 12 : i32
    %184 = arith.index_cast %3 : i32 to index
    %c0_71 = arith.constant 0 : index
    %185 = vector.load %arg2[%184, %c0_71] : memref<16x128xf32, #tpu.memory_space<vmem>>, vector<16x128xf32>
    %186 = arith.index_cast %c12_i32 : i32 to index
    %c0_72 = arith.constant 0 : index
    %c0_73 = arith.constant 0 : index
    %187 = vector.load %arg4[%186, %c0_72, %c0_73] : memref<16x16x256xf32, #tpu.memory_space<vmem>>, vector<1x16x128xf32>
    %188 = vector.shape_cast %187 : vector<1x16x128xf32> to vector<16x128xf32>
    %189 = vector.shape_cast %185 : vector<16x128xf32> to vector<1x16x128xf32>
    tpu.vector_store %arg4[%186, %c0_72, %c0_73], %189 {strides = array<i32>} : memref<16x16x256xf32, #tpu.memory_space<vmem>>, vector<1x16x128xf32>,
    %190 = arith.addi %1, %c12_i32 : i32
    %191 = arith.index_cast %190 : i32 to index
    %c0_74 = arith.constant 0 : index
    %192 = vector.load %arg3[%191, %c0_74] : memref<16x128xf32, #tpu.memory_space<vmem>>, vector<1x128xf32>
    %193 = vector.shape_cast %192 : vector<1x128xf32> to vector<1x128xf32>
    %194 = vector.broadcast %193 : vector<1x128xf32> to vector<16x128xf32>
    %195 = arith.index_cast %c12_i32 : i32 to index
    %c0_75 = arith.constant 0 : index
    %c128_76 = arith.constant 128 : index
    %196 = vector.load %arg4[%195, %c0_75, %c128_76] : memref<16x16x256xf32, #tpu.memory_space<vmem>>, vector<1x16x128xf32>
    %197 = vector.shape_cast %196 : vector<1x16x128xf32> to vector<16x128xf32>
    %198 = vector.shape_cast %194 : vector<16x128xf32> to vector<1x16x128xf32>
    tpu.vector_store %arg4[%195, %c0_75, %c128_76], %198 {strides = array<i32>} : memref<16x16x256xf32, #tpu.memory_space<vmem>>, vector<1x16x128xf32>,
    %c13_i32 = arith.constant 13 : i32
    %199 = arith.index_cast %3 : i32 to index
    %c0_77 = arith.constant 0 : index
    %200 = vector.load %arg2[%199, %c0_77] : memref<16x128xf32, #tpu.memory_space<vmem>>, vector<16x128xf32>
    %201 = arith.index_cast %c13_i32 : i32 to index
    %c0_78 = arith.constant 0 : index
    %c0_79 = arith.constant 0 : index
    %202 = vector.load %arg4[%201, %c0_78, %c0_79] : memref<16x16x256xf32, #tpu.memory_space<vmem>>, vector<1x16x128xf32>
    %203 = vector.shape_cast %202 : vector<1x16x128xf32> to vector<16x128xf32>
    %204 = vector.shape_cast %200 : vector<16x128xf32> to vector<1x16x128xf32>
    tpu.vector_store %arg4[%201, %c0_78, %c0_79], %204 {strides = array<i32>} : memref<16x16x256xf32, #tpu.memory_space<vmem>>, vector<1x16x128xf32>,
    %205 = arith.addi %1, %c13_i32 : i32
    %206 = arith.index_cast %205 : i32 to index
    %c0_80 = arith.constant 0 : index
    %207 = vector.load %arg3[%206, %c0_80] : memref<16x128xf32, #tpu.memory_space<vmem>>, vector<1x128xf32>
    %208 = vector.shape_cast %207 : vector<1x128xf32> to vector<1x128xf32>
    %209 = vector.broadcast %208 : vector<1x128xf32> to vector<16x128xf32>
    %210 = arith.index_cast %c13_i32 : i32 to index
    %c0_81 = arith.constant 0 : index
    %c128_82 = arith.constant 128 : index
    %211 = vector.load %arg4[%210, %c0_81, %c128_82] : memref<16x16x256xf32, #tpu.memory_space<vmem>>, vector<1x16x128xf32>
    %212 = vector.shape_cast %211 : vector<1x16x128xf32> to vector<16x128xf32>
    %213 = vector.shape_cast %209 : vector<16x128xf32> to vector<1x16x128xf32>
    tpu.vector_store %arg4[%210, %c0_81, %c128_82], %213 {strides = array<i32>} : memref<16x16x256xf32, #tpu.memory_space<vmem>>, vector<1x16x128xf32>,
    %c14_i32 = arith.constant 14 : i32
    %214 = arith.index_cast %3 : i32 to index
    %c0_83 = arith.constant 0 : index
    %215 = vector.load %arg2[%214, %c0_83] : memref<16x128xf32, #tpu.memory_space<vmem>>, vector<16x128xf32>
    %216 = arith.index_cast %c14_i32 : i32 to index
    %c0_84 = arith.constant 0 : index
    %c0_85 = arith.constant 0 : index
    %217 = vector.load %arg4[%216, %c0_84, %c0_85] : memref<16x16x256xf32, #tpu.memory_space<vmem>>, vector<1x16x128xf32>
    %218 = vector.shape_cast %217 : vector<1x16x128xf32> to vector<16x128xf32>
    %219 = vector.shape_cast %215 : vector<16x128xf32> to vector<1x16x128xf32>
    tpu.vector_store %arg4[%216, %c0_84, %c0_85], %219 {strides = array<i32>} : memref<16x16x256xf32, #tpu.memory_space<vmem>>, vector<1x16x128xf32>,
    %220 = arith.addi %1, %c14_i32 : i32
    %221 = arith.index_cast %220 : i32 to index
    %c0_86 = arith.constant 0 : index
    %222 = vector.load %arg3[%221, %c0_86] : memref<16x128xf32, #tpu.memory_space<vmem>>, vector<1x128xf32>
    %223 = vector.shape_cast %222 : vector<1x128xf32> to vector<1x128xf32>
    %224 = vector.broadcast %223 : vector<1x128xf32> to vector<16x128xf32>
    %225 = arith.index_cast %c14_i32 : i32 to index
    %c0_87 = arith.constant 0 : index
    %c128_88 = arith.constant 128 : index
    %226 = vector.load %arg4[%225, %c0_87, %c128_88] : memref<16x16x256xf32, #tpu.memory_space<vmem>>, vector<1x16x128xf32>
    %227 = vector.shape_cast %226 : vector<1x16x128xf32> to vector<16x128xf32>
    %228 = vector.shape_cast %224 : vector<16x128xf32> to vector<1x16x128xf32>
    tpu.vector_store %arg4[%225, %c0_87, %c128_88], %228 {strides = array<i32>} : memref<16x16x256xf32, #tpu.memory_space<vmem>>, vector<1x16x128xf32>,
    %c15_i32 = arith.constant 15 : i32
    %229 = arith.index_cast %3 : i32 to index
    %c0_89 = arith.constant 0 : index
    %230 = vector.load %arg2[%229, %c0_89] : memref<16x128xf32, #tpu.memory_space<vmem>>, vector<16x128xf32>
    %231 = arith.index_cast %c15_i32 : i32 to index
    %c0_90 = arith.constant 0 : index
    %c0_91 = arith.constant 0 : index
    %232 = vector.load %arg4[%231, %c0_90, %c0_91] : memref<16x16x256xf32, #tpu.memory_space<vmem>>, vector<1x16x128xf32>
    %233 = vector.shape_cast %232 : vector<1x16x128xf32> to vector<16x128xf32>
    %234 = vector.shape_cast %230 : vector<16x128xf32> to vector<1x16x128xf32>
    tpu.vector_store %arg4[%231, %c0_90, %c0_91], %234 {strides = array<i32>} : memref<16x16x256xf32, #tpu.memory_space<vmem>>, vector<1x16x128xf32>,
    %235 = arith.addi %1, %c15_i32 : i32
    %236 = arith.index_cast %235 : i32 to index
    %c0_92 = arith.constant 0 : index
    %237 = vector.load %arg3[%236, %c0_92] : memref<16x128xf32, #tpu.memory_space<vmem>>, vector<1x128xf32>
    %238 = vector.shape_cast %237 : vector<1x128xf32> to vector<1x128xf32>
    %239 = vector.broadcast %238 : vector<1x128xf32> to vector<16x128xf32>
    %240 = arith.index_cast %c15_i32 : i32 to index
    %c0_93 = arith.constant 0 : index
    %c128_94 = arith.constant 128 : index
    %241 = vector.load %arg4[%240, %c0_93, %c128_94] : memref<16x16x256xf32, #tpu.memory_space<vmem>>, vector<1x16x128xf32>
    %242 = vector.shape_cast %241 : vector<1x16x128xf32> to vector<16x128xf32>
    %243 = vector.shape_cast %239 : vector<16x128xf32> to vector<1x16x128xf32>
    tpu.vector_store %arg4[%240, %c0_93, %c128_94], %243 {strides = array<i32>} : memref<16x16x256xf32, #tpu.memory_space<vmem>>, vector<1x16x128xf32>,
    %c16_i32_95 = arith.constant 16 : i32
    return
  }
  func.func @transform_0(%arg0: i32, %arg1: i32) -> (i32, i32) {
    %c0_i32 = arith.constant 0 : i32
    %c0_i32_0 = arith.constant 0 : i32
    %c0_i32_1 = arith.constant 0 : i32
    return %c0_i32, %c0_i32_0 : i32, i32
  }
  func.func @transform_1(%arg0: i32, %arg1: i32) -> (i32, i32) {
    %c0_i32 = arith.constant 0 : i32
    %c0_i32_0 = arith.constant 0 : i32
    %c0_i32_1 = arith.constant 0 : i32
    return %c0_i32, %c0_i32_0 : i32, i32
  }
  func.func @transform_2(%arg0: i32, %arg1: i32) -> (i32, i32, i32) {
    %c0_i32 = arith.constant 0 : i32
    %c0_i32_0 = arith.constant 0 : i32
    return %arg0, %arg1, %c0_i32 : i32, i32, i32
  }
}

</mosaic_0001>

<llo_original>
// kernel: tpu_custom_call.1
$region0: #{tpu_custom_call.1}
  #allocation0 [shape = 'u32[]', space=smem, size = 0x4, offset = 0x4, fixed_abs, tag = 'smem constant byte address 0x4 - core index']
  #allocation1 [shape = 'u32[144,128]{1,0:T(1,128)}', space=vmem, size = 0x12000, scoped, tag = 'internal scratch']
  %s0 = inlined_call_operand.hbm [shape: f32[16,128], index: 0, kind: input, shape index: {}]
  %s1 = inlined_call_operand.hbm [shape: f32[16,128], index: 1, kind: input, shape index: {}]
  %s2 = inlined_call_operand.hbm [shape: f32[16,16,256], index: 2, kind: output, shape index: {}]
  %s3 = sld [smem:[#allocation0]]
  $region26: #{tpu_custom_call.1} parent=0
    _
  %s5 = ssub.s32 1, %s3
  %s6 = scalar_select 0, %s5, %s3
  $region1: #{tpu_custom_call.1} parent=0
    #allocation2 [shape = 'u8[8192]{0}', space=vmem, size = 0x2000, scoped, tag = 'input window, operand 0, single buffered']
    #allocation3 [shape = 's32[1]{0}', space=sflag, size = 0x4, scoped, tag = 'scoped memory for tpu_custom_call.1']
    #allocation4 [shape = 's32[1]{0}', space=sflag, size = 0x4, scoped, tag = 'scoped memory for tpu_custom_call.1']
    #allocation5 [shape = 'u8[8192]{0}', space=vmem, size = 0x2000, scoped, tag = 'input window, operand 1, single buffered']
    #allocation6 [shape = 's32[1]{0}', space=sflag, size = 0x4, scoped, tag = 'scoped memory for tpu_custom_call.1']
    #allocation7 [shape = 'u8[262144]{0}', space=vmem, size = 0x40000, scoped, tag = 'output window, operand 0, single buffered']
    %7 = vsyncpa [#allocation3], 0
    %8 = vsyncpa [#allocation6], 0
    %9 = vsyncpa [#allocation4], 0
    // Predicated region
    $region2: #{tpu_custom_call.1} parent=1 // pred_check
      _
    $region3: #{tpu_custom_call.1} parent=1 // pred_check_branch
      %11 = sbr.rel (0) target = $region5
    $region4: #{tpu_custom_call.1} parent=1 // pred_region
      %s13 = ssub.s32 256, 256
      %14 = vsyncadd [#allocation3], %s13
      %s15 = sshll.u32 [#allocation2], 4
      %s16 = int_to_ptr.vmem [resolvable:$true] %s15
      %21 = dma.hbm_to_vmem [thread:$0]  %s0, 256, %s16, [#allocation3], 128, 128, 8
    $region5: #{tpu_custom_call.1} parent=1 // pred_fallthru
      _
    // Predicated region
    $region6: #{tpu_custom_call.1} parent=1 // pred_check
      _
    $region7: #{tpu_custom_call.1} parent=1 // pred_check_branch
      %23 = sbr.rel (0) target = $region9
    $region8: #{tpu_custom_call.1} parent=1 // pred_region
      %s25 = ssub.s32 256, 256
      %26 = vsyncadd [#allocation6], %s25
      %s27 = sshll.u32 [#allocation5], 4
      %s28 = int_to_ptr.vmem [resolvable:$true] %s27
      %33 = dma.hbm_to_vmem [thread:$0]  %s1, 256, %s28, [#allocation6], 128, 128, 8
    $region9: #{tpu_custom_call.1} parent=1 // pred_fallthru
      _
    // Predicated region
    $region10: #{tpu_custom_call.1} parent=1 // pred_check
      _
    $region11: #{tpu_custom_call.1} parent=1 // pred_check_branch
      %35 = sbr.rel (0) target = $region13
    $region12: #{tpu_custom_call.1} parent=1 // pred_region
      %36 = dma.done [#allocation3], 256
    $region13: #{tpu_custom_call.1} parent=1 // pred_fallthru
      _
    // Predicated region
    $region14: #{tpu_custom_call.1} parent=1 // pred_check
      _
    $region15: #{tpu_custom_call.1} parent=1 // pred_check_branch
      %38 = sbr.rel (0) target = $region17
    $region16: #{tpu_custom_call.1} parent=1 // pred_region
      %39 = dma.done [#allocation6], 256
    $region17: #{tpu_custom_call.1} parent=1 // pred_fallthru
      _
    %s40 = smul.u32 0, 16
    %s41 = smul.u32 0, 16
    %s42 = scalar_lea.vmem [#allocation2], %s41
    %v43 = vld [vmem:[%s42] sm:$0xff]
    %v44 = vld [vmem:[%s42 + $0x8] sm:$0xff]
    %45 = vst [vmem:[#allocation7] sm:$0xff] %v43
    %46 = vst [vmem:[#allocation7 + $0x10] sm:$0xff] %v44
    %s47 = scalar_lea.vmem [#allocation5], %s40
    %v48 = vld [vmem:[%s47] sm:$0x1]
    %v49 = vlaneseq
    %v50 = vshrl.u32 %v49, 7
    %v51 = vsub.s32 0, %v50
    %v52 = vrot.slane %v48, %v51
    %53 = vst [vmem:[#allocation7 + $0x8] sm:$0xff] %v52
    %54 = vst [vmem:[#allocation7 + $0x18] sm:$0xff] %v52
    %v55 = vld [vmem:[%s42] sm:$0xff]
    %v56 = vld [vmem:[%s42 + $0x8] sm:$0xff]
    %s57 = scalar_lea.vmem [#allocation7], 32
    %58 = vst [vmem:[%s57] sm:$0xff] %v55
    %59 = vst [vmem:[%s57 + $0x10] sm:$0xff] %v56
    %s60 = sadd.s32 %s40, 1
    %s61 = scalar_lea.vmem [#allocation5], %s60
    %v62 = vld [vmem:[%s61] sm:$0x1]
    %v63 = vlaneseq
    %v64 = vshrl.u32 %v63, 7
    %v65 = vsub.s32 0, %v64
    %v66 = vrot.slane %v62, %v65
    %67 = vst [vmem:[%s57 + $0x8] sm:$0xff] %v66
    %68 = vst [vmem:[%s57 + $0x18] sm:$0xff] %v66
    %v69 = vld [vmem:[%s42] sm:$0xff]
    %v70 = vld [vmem:[%s42 + $0x8] sm:$0xff]
    %s71 = scalar_lea.vmem [#allocation7], 64
    %72 = vst [vmem:[%s71] sm:$0xff] %v69
    %73 = vst [vmem:[%s71 + $0x10] sm:$0xff] %v70
    %s74 = sadd.s32 %s40, 2
    %s75 = scalar_lea.vmem [#allocation5], %s74
    %v76 = vld [vmem:[%s75] sm:$0x1]
    %v77 = vlaneseq
    %v78 = vshrl.u32 %v77, 7
    %v79 = vsub.s32 0, %v78
    %v80 = vrot.slane %v76, %v79
    %81 = vst [vmem:[%s71 + $0x8] sm:$0xff] %v80
    %82 = vst [vmem:[%s71 + $0x18] sm:$0xff] %v80
    %v83 = vld [vmem:[%s42] sm:$0xff]
    %v84 = vld [vmem:[%s42 + $0x8] sm:$0xff]
    %s85 = scalar_lea.vmem [#allocation7], 96
    %86 = vst [vmem:[%s85] sm:$0xff] %v83
    %87 = vst [vmem:[%s85 + $0x10] sm:$0xff] %v84
    %s88 = sadd.s32 %s40, 3
    %s89 = scalar_lea.vmem [#allocation5], %s88
    %v90 = vld [vmem:[%s89] sm:$0x1]
    %v91 = vlaneseq
    %v92 = vshrl.u32 %v91, 7
    %v93 = vsub.s32 0, %v92
    %v94 = vrot.slane %v90, %v93
    %95 = vst [vmem:[%s85 + $0x8] sm:$0xff] %v94
    %96 = vst [vmem:[%s85 + $0x18] sm:$0xff] %v94
    %v97 = vld [vmem:[%s42] sm:$0xff]
    %v98 = vld [vmem:[%s42 + $0x8] sm:$0xff]
    %s99 = scalar_lea.vmem [#allocation7], 128
    %100 = vst [vmem:[%s99] sm:$0xff] %v97
    %101 = vst [vmem:[%s99 + $0x10] sm:$0xff] %v98
    %s102 = sadd.s32 %s40, 4
    %s103 = scalar_lea.vmem [#allocation5], %s102
    %v104 = vld [vmem:[%s103] sm:$0x1]
    %v105 = vlaneseq
    %v106 = vshrl.u32 %v105, 7
    %v107 = vsub.s32 0, %v106
    %v108 = vrot.slane %v104, %v107
    %109 = vst [vmem:[%s99 + $0x8] sm:$0xff] %v108
    %110 = vst [vmem:[%s99 + $0x18] sm:$0xff] %v108
    %v111 = vld [vmem:[%s42] sm:$0xff]
    %v112 = vld [vmem:[%s42 + $0x8] sm:$0xff]
    %s113 = scalar_lea.vmem [#allocation7], 160
    %114 = vst [vmem:[%s113] sm:$0xff] %v111
    %115 = vst [vmem:[%s113 + $0x10] sm:$0xff] %v112
    %s116 = sadd.s32 %s40, 5
    %s117 = scalar_lea.vmem [#allocation5], %s116
    %v118 = vld [vmem:[%s117] sm:$0x1]
    %v119 = vlaneseq
    %v120 = vshrl.u32 %v119, 7
    %v121 = vsub.s32 0, %v120
    %v122 = vrot.slane %v118, %v121
    %123 = vst [vmem:[%s113 + $0x8] sm:$0xff] %v122
    %124 = vst [vmem:[%s113 + $0x18] sm:$0xff] %v122
    %v125 = vld [vmem:[%s42] sm:$0xff]
    %v126 = vld [vmem:[%s42 + $0x8] sm:$0xff]
    %s127 = scalar_lea.vmem [#allocation7], 192
    %128 = vst [vmem:[%s127] sm:$0xff] %v125
    %129 = vst [vmem:[%s127 + $0x10] sm:$0xff] %v126
    %s130 = sadd.s32 %s40, 6
    %s131 = scalar_lea.vmem [#allocation5], %s130
    %v132 = vld [vmem:[%s131] sm:$0x1]
    %v133 = vlaneseq
    %v134 = vshrl.u32 %v133, 7
    %v135 = vsub.s32 0, %v134
    %v136 = vrot.slane %v132, %v135
    %137 = vst [vmem:[%s127 + $0x8] sm:$0xff] %v136
    %138 = vst [vmem:[%s127 + $0x18] sm:$0xff] %v136
    %v139 = vld [vmem:[%s42] sm:$0xff]
    %v140 = vld [vmem:[%s42 + $0x8] sm:$0xff]
    %s141 = scalar_lea.vmem [#allocation7], 224
    %142 = vst [vmem:[%s141] sm:$0xff] %v139
    %143 = vst [vmem:[%s141 + $0x10] sm:$0xff] %v140
    %s144 = sadd.s32 %s40, 7
    %s145 = scalar_lea.vmem [#allocation5], %s144
    %v146 = vld [vmem:[%s145] sm:$0x1]
    %v147 = vlaneseq
    %v148 = vshrl.u32 %v147, 7
    %v149 = vsub.s32 0, %v148
    %v150 = vrot.slane %v146, %v149
    %151 = vst [vmem:[%s141 + $0x8] sm:$0xff] %v150
    %152 = vst [vmem:[%s141 + $0x18] sm:$0xff] %v150
    %v153 = vld [vmem:[%s42] sm:$0xff]
    %v154 = vld [vmem:[%s42 + $0x8] sm:$0xff]
    %s155 = scalar_lea.vmem [#allocation7], 256
    %156 = vst [vmem:[%s155] sm:$0xff] %v153
    %157 = vst [vmem:[%s155 + $0x10] sm:$0xff] %v154
    %s158 = sadd.s32 %s40, 8
    %s159 = scalar_lea.vmem [#allocation5], %s158
    %v160 = vld [vmem:[%s159] sm:$0x1]
    %v161 = vlaneseq
    %v162 = vshrl.u32 %v161, 7
    %v163 = vsub.s32 0, %v162
    %v164 = vrot.slane %v160, %v163
    %165 = vst [vmem:[%s155 + $0x8] sm:$0xff] %v164
    %166 = vst [vmem:[%s155 + $0x18] sm:$0xff] %v164
    %v167 = vld [vmem:[%s42] sm:$0xff]
    %v168 = vld [vmem:[%s42 + $0x8] sm:$0xff]
    %s169 = scalar_lea.vmem [#allocation7], 288
    %170 = vst [vmem:[%s169] sm:$0xff] %v167
    %171 = vst [vmem:[%s169 + $0x10] sm:$0xff] %v168
    %s172 = sadd.s32 %s40, 9
    %s173 = scalar_lea.vmem [#allocation5], %s172
    %v174 = vld [vmem:[%s173] sm:$0x1]
    %v175 = vlaneseq
    %v176 = vshrl.u32 %v175, 7
    %v177 = vsub.s32 0, %v176
    %v178 = vrot.slane %v174, %v177
    %179 = vst [vmem:[%s169 + $0x8] sm:$0xff] %v178
    %180 = vst [vmem:[%s169 + $0x18] sm:$0xff] %v178
    %v181 = vld [vmem:[%s42] sm:$0xff]
    %v182 = vld [vmem:[%s42 + $0x8] sm:$0xff]
    %s183 = scalar_lea.vmem [#allocation7], 320
    %184 = vst [vmem:[%s183] sm:$0xff] %v181
    %185 = vst [vmem:[%s183 + $0x10] sm:$0xff] %v182
    %s186 = sadd.s32 %s40, 10
    %s187 = scalar_lea.vmem [#allocation5], %s186
    %v188 = vld [vmem:[%s187] sm:$0x1]
    %v189 = vlaneseq
    %v190 = vshrl.u32 %v189, 7
    %v191 = vsub.s32 0, %v190
    %v192 = vrot.slane %v188, %v191
    %193 = vst [vmem:[%s183 + $0x8] sm:$0xff] %v192
    %194 = vst [vmem:[%s183 + $0x18] sm:$0xff] %v192
    %v195 = vld [vmem:[%s42] sm:$0xff]
    %v196 = vld [vmem:[%s42 + $0x8] sm:$0xff]
    %s197 = scalar_lea.vmem [#allocation7], 352
    %198 = vst [vmem:[%s197] sm:$0xff] %v195
    %199 = vst [vmem:[%s197 + $0x10] sm:$0xff] %v196
    %s200 = sadd.s32 %s40, 11
    %s201 = scalar_lea.vmem [#allocation5], %s200
    %v202 = vld [vmem:[%s201] sm:$0x1]
    %v203 = vlaneseq
    %v204 = vshrl.u32 %v203, 7
    %v205 = vsub.s32 0, %v204
    %v206 = vrot.slane %v202, %v205
    %207 = vst [vmem:[%s197 + $0x8] sm:$0xff] %v206
    %208 = vst [vmem:[%s197 + $0x18] sm:$0xff] %v206
    %v209 = vld [vmem:[%s42] sm:$0xff]
    %v210 = vld [vmem:[%s42 + $0x8] sm:$0xff]
    %s211 = scalar_lea.vmem [#allocation7], 384
    %212 = vst [vmem:[%s211] sm:$0xff] %v209
    %213 = vst [vmem:[%s211 + $0x10] sm:$0xff] %v210
    %s214 = sadd.s32 %s40, 12
    %s215 = scalar_lea.vmem [#allocation5], %s214
    %v216 = vld [vmem:[%s215] sm:$0x1]
    %v217 = vlaneseq
    %v218 = vshrl.u32 %v217, 7
    %v219 = vsub.s32 0, %v218
    %v220 = vrot.slane %v216, %v219
    %221 = vst [vmem:[%s211 + $0x8] sm:$0xff] %v220
    %222 = vst [vmem:[%s211 + $0x18] sm:$0xff] %v220
    %v223 = vld [vmem:[%s42] sm:$0xff]
    %v224 = vld [vmem:[%s42 + $0x8] sm:$0xff]
    %s225 = scalar_lea.vmem [#allocation7], 416
    %226 = vst [vmem:[%s225] sm:$0xff] %v223
    %227 = vst [vmem:[%s225 + $0x10] sm:$0xff] %v224
    %s228 = sadd.s32 %s40, 13
    %s229 = scalar_lea.vmem [#allocation5], %s228
    %v230 = vld [vmem:[%s229] sm:$0x1]
    %v231 = vlaneseq
    %v232 = vshrl.u32 %v231, 7
    %v233 = vsub.s32 0, %v232
    %v234 = vrot.slane %v230, %v233
    %235 = vst [vmem:[%s225 + $0x8] sm:$0xff] %v234
    %236 = vst [vmem:[%s225 + $0x18] sm:$0xff] %v234
    %v237 = vld [vmem:[%s42] sm:$0xff]
    %v238 = vld [vmem:[%s42 + $0x8] sm:$0xff]
    %s239 = scalar_lea.vmem [#allocation7], 448
    %240 = vst [vmem:[%s239] sm:$0xff] %v237
    %241 = vst [vmem:[%s239 + $0x10] sm:$0xff] %v238
    %s242 = sadd.s32 %s40, 14
    %s243 = scalar_lea.vmem [#allocation5], %s242
    %v244 = vld [vmem:[%s243] sm:$0x1]
    %v245 = vlaneseq
    %v246 = vshrl.u32 %v245, 7
    %v247 = vsub.s32 0, %v246
    %v248 = vrot.slane %v244, %v247
    %249 = vst [vmem:[%s239 + $0x8] sm:$0xff] %v248
    %250 = vst [vmem:[%s239 + $0x18] sm:$0xff] %v248
    %v251 = vld [vmem:[%s42] sm:$0xff]
    %v252 = vld [vmem:[%s42 + $0x8] sm:$0xff]
    %s253 = scalar_lea.vmem [#allocation7], 480
    %254 = vst [vmem:[%s253] sm:$0xff] %v251
    %255 = vst [vmem:[%s253 + $0x10] sm:$0xff] %v252
    %s256 = sadd.s32 %s40, 15
    %s257 = scalar_lea.vmem [#allocation5], %s256
    %v258 = vld [vmem:[%s257] sm:$0x1]
    %v259 = vlaneseq
    %v260 = vshrl.u32 %v259, 7
    %v261 = vsub.s32 0, %v260
    %v262 = vrot.slane %v258, %v261
    %263 = vst [vmem:[%s253 + $0x8] sm:$0xff] %v262
    %264 = vst [vmem:[%s253 + $0x18] sm:$0xff] %v262
    // Predicated region
    $region18: #{tpu_custom_call.1} parent=1 // pred_check
      _
    $region19: #{tpu_custom_call.1} parent=1 // pred_check_branch
      %266 = sbr.rel (0) target = $region21
    $region20: #{tpu_custom_call.1} parent=1 // pred_region
      %s268 = ssub.s32 8192, 8192
      %269 = vsyncadd [#allocation4], %s268
      %s270 = sshll.u32 [#allocation7], 4
      %s271 = int_to_ptr.vmem [resolvable:$true] %s270
      %276 = dma.vmem_to_hbm [thread:$0]  %s271, 8192, %s2, [#allocation4], 256, 256, 16
    $region21: #{tpu_custom_call.1} parent=1 // pred_fallthru
      _
    // Predicated region
    $region22: #{tpu_custom_call.1} parent=1 // pred_check
      _
    $region23: #{tpu_custom_call.1} parent=1 // pred_check_branch
      %278 = sbr.rel (0) target = $region25
    $region24: #{tpu_custom_call.1} parent=1 // pred_region
      %279 = dma.done [#allocation4], 8192
    $region25: #{tpu_custom_call.1} parent=1 // pred_fallthru
      _
    %280 = vsyncpa [#allocation3], 1
    %281 = vsyncpa [#allocation6], 1
    %282 = vsyncpa [#allocation4], 1

</llo_original>
